<compile_context>
chip_gen: v5e
topology: v5e:2x2
jax: 0.10.0
libtpu: 0.0.40
codegen_flags: <defaults>
</compile_context>

<pallas_src>
import jax
import jax.numpy as jnp
from jax.experimental import pallas as pl
from jax.experimental.pallas import tpu as pltpu

LANE = 128


def _conv1x1_kernel(x_ref, w_ref, b_ref, o_ref):
    """One (batch tile, spatial tile) grid step.

    x_ref : (TILE_N, C_in, R, 128)   VMEM, dense f32 activation slabs
    w_ref : (C_out * C_in,)          SMEM, row-major weight scalars W[o, c]
    b_ref : (C_out,)                 SMEM, bias scalars
    o_ref : (TILE_N, C_out, R, 128)  VMEM, dense output slabs
    """
    tile_n = x_ref.shape[0]
    c_in = x_ref.shape[1]
    c_out = o_ref.shape[1]

    for b in range(tile_n):                       # static unroll (small)
        xs = [x_ref[b, c] for c in range(c_in)]   # (R, 128) dense slabs
        for o in range(c_out):                    # static unroll (small)
            # Scalar-splat FMAs on the VPU; f32 accumulation throughout.
            acc = xs[0] * w_ref[o * c_in] + b_ref[o]
            for c in range(1, c_in):
                acc = acc + xs[c] * w_ref[o * c_in + c]
            o_ref[b, o] = acc.astype(o_ref.dtype)


def out_block_forward(x_nchw, weight, bias, *,
                      max_tile_hw=65536, target_step_bytes=2 << 20):
    """1x1 conv (OutBlock.forward).

    x_nchw : (N, C_in, H, W)     float32
    weight : (C_out, C_in, 1, 1) float32  (PyTorch Conv2d layout)
    bias   : (C_out,)            float32
    returns (N, C_out, H, W)     float32
    """
    N, C_in, H, W = x_nchw.shape
    C_out = weight.shape[0]
    HW = H * W

    # Pad the flattened spatial axis to a multiple of 128 so every block is
    # lane-dense (no masked vst). No-op for the common H*W % 128 == 0 case.
    HW_pad = pl.cdiv(HW, LANE) * LANE
    n_rows = HW_pad // LANE

    x_flat = x_nchw.reshape(N, C_in, HW)          # NCHW is already contiguous
    if HW_pad != HW:
        x_flat = jnp.pad(x_flat, ((0, 0), (0, 0), (0, HW_pad - HW)))
    x4 = x_flat.reshape(N, C_in, n_rows, LANE)

    w_flat = weight.reshape(C_out * C_in)         # row-major: index o*C_in + c
    b_vec = bias.reshape(C_out)

    itemsize = jnp.dtype(x_nchw.dtype).itemsize
    bytes_per_lane = (C_in + C_out) * itemsize    # in + out HBM bytes per pixel
    row_bytes = LANE * bytes_per_lane

    # --- Spatial tile: enough 128-lane rows to reach ~target bytes/step. ---
    desired_rows = max(1, -(-target_step_bytes // row_bytes))   # ceil div
    tile_rows = min(n_rows, max(1, max_tile_hw // LANE), desired_rows)
    if tile_rows < n_rows:
        # (8, 128) rule: last-two block dims must be multiples of (8, 128)
        # or equal the full array dims.
        tile_rows = min(n_rows, ((tile_rows + 7) // 8) * 8)

    # --- Batch tile: when a whole image fits in one spatial tile, pack
    # several images per step so it still moves ~target bytes. ---
    if tile_rows == n_rows:
        per_image_bytes = n_rows * row_bytes
        tile_n = int(min(N, max(1, target_step_bytes // max(per_image_bytes, 1))))
        while N % tile_n != 0:    # keep blocks exact along the batch axis
            tile_n -= 1
    else:
        tile_n = 1

    grid = (N // tile_n, pl.cdiv(n_rows, tile_rows))

    cost = pl.CostEstimate(
        flops=2 * N * HW_pad * C_in * C_out,
        bytes_accessed=itemsize * (N * HW_pad * (C_in + C_out) + C_in * C_out + C_out),
        transcendentals=0,
    )

    out4 = pl.pallas_call(
        _conv1x1_kernel,
        out_shape=jax.ShapeDtypeStruct((N, C_out, n_rows, LANE), x_nchw.dtype),
        grid_spec=pltpu.PrefetchScalarGridSpec(
            num_scalar_prefetch=0,
            grid=grid,
            in_specs=[
                # Activations: a contiguous (tile_n, C_in, tile_rows, 128) slab.
                pl.BlockSpec((tile_n, C_in, tile_rows, LANE),
                             lambda n, s: (n, 0, s, 0)),
                # Weight / bias scalars, resident in SMEM across the grid.
                pl.BlockSpec(memory_space=pltpu.MemorySpace.SMEM),
                pl.BlockSpec(memory_space=pltpu.MemorySpace.SMEM),
            ],
            out_specs=pl.BlockSpec((tile_n, C_out, tile_rows, LANE),
                                   lambda n, s: (n, 0, s, 0)),
        ),
        compiler_params=pltpu.CompilerParams(
            dimension_semantics=("parallel", "parallel"),
        ),
        cost_estimate=cost,
    )(x4, w_flat, b_vec)

    out_flat = out4.reshape(N, C_out, HW_pad)
    if HW_pad != HW:
        out_flat = out_flat[:, :, :HW]
    return out_flat.reshape(N, C_out, H, W)


def _reference(x_nchw, weight, bias):
    # Pure-JAX reference of the 1x1 conv for correctness checking.
    w_mat = weight.reshape(weight.shape[0], weight.shape[1])   # (C_out, C_in)
    return jnp.einsum("nchw,oc->nohw", x_nchw, w_mat) + bias[None, :, None, None]


if __name__ == "__main__":
    # Small shapes consistent with OutBlock(in_ch=4, out_ch=8) on a 2x4x16x16 input.
    N, C_in, C_out, H, W = 2, 4, 8, 16, 16

    key = jax.random.PRNGKey(0)
    kx, kw, kb = jax.random.split(key, 3)

    x = jax.random.normal(kx, (N, C_in, H, W), dtype=jnp.float32)
    # Deterministic parameter init (mimics Conv2d's uniform(-1/sqrt(fan_in), +)).
    bound = 1.0 / (C_in ** 0.5)
    weight = jax.random.uniform(kw, (C_out, C_in, 1, 1), jnp.float32, -bound, bound)
    bias = jax.random.uniform(kb, (C_out,), jnp.float32, -bound, bound)

    y = out_block_forward(x, weight, bias)
    y = jax.block_until_ready(y)
    y_ref = _reference(x, weight, bias)
    assert y.shape == (N, C_out, H, W)
    assert jnp.allclose(y, y_ref, atol=1e-5, rtol=1e-5)

    # Also exercise the non-128-multiple spatial path (wrapper pad + slice).
    x2 = jax.random.normal(kx, (N, C_in, 10, 10), dtype=jnp.float32)
    y2 = jax.block_until_ready(out_block_forward(x2, weight, bias))
    y2_ref = _reference(x2, weight, bias)
    assert y2.shape == (N, C_out, 10, 10)
    assert jnp.allclose(y2, y2_ref, atol=1e-5, rtol=1e-5)

    print("KERNEL_OK")
</pallas_src>

<mosaic_0001>
module attributes {stable_mosaic.version = 11 : i64} {
  func.func @_conv1x1_kernel(%arg0: i32, %arg1: i32, %arg2: memref<2x4x2x128xf32, #tpu.memory_space<vmem>>, %arg3: memref<32xf32, #tpu.memory_space<smem>>, %arg4: memref<8xf32, #tpu.memory_space<smem>>, %arg5: memref<2x8x2x128xf32, #tpu.memory_space<vmem>>) attributes {dimension_semantics = [#tpu.dimension_semantics<parallel>, #tpu.dimension_semantics<parallel>], iteration_bounds = array<i64: 1, 1>, scalar_prefetch = 0 : i64, scratch_operands = 0 : i64, tpu.core_type = #tpu.core_type<tc>, window_params = [{transform_indices = @transform_0, window_bounds = array<i64: 2, 4, 2, 128>}, {transform_indices = @transform_1, window_bounds = array<i64: 32>}, {transform_indices = @transform_2, window_bounds = array<i64: 8>}, {transform_indices = @transform_3, window_bounds = array<i64: 2, 8, 2, 128>}]} {
    %c0 = arith.constant 0 : index
    %c0_0 = arith.constant 0 : index
    %c0_1 = arith.constant 0 : index
    %c0_2 = arith.constant 0 : index
    %0 = vector.load %arg2[%c0, %c0_0, %c0_1, %c0_2] : memref<2x4x2x128xf32, #tpu.memory_space<vmem>>, vector<1x1x2x128xf32>
    %1 = vector.shape_cast %0 : vector<1x1x2x128xf32> to vector<2x128xf32>
    %c0_3 = arith.constant 0 : index
    %c1 = arith.constant 1 : index
    %c0_4 = arith.constant 0 : index
    %c0_5 = arith.constant 0 : index
    %2 = vector.load %arg2[%c0_3, %c1, %c0_4, %c0_5] : memref<2x4x2x128xf32, #tpu.memory_space<vmem>>, vector<1x1x2x128xf32>
    %3 = vector.shape_cast %2 : vector<1x1x2x128xf32> to vector<2x128xf32>
    %c0_6 = arith.constant 0 : index
    %c2 = arith.constant 2 : index
    %c0_7 = arith.constant 0 : index
    %c0_8 = arith.constant 0 : index
    %4 = vector.load %arg2[%c0_6, %c2, %c0_7, %c0_8] : memref<2x4x2x128xf32, #tpu.memory_space<vmem>>, vector<1x1x2x128xf32>
    %5 = vector.shape_cast %4 : vector<1x1x2x128xf32> to vector<2x128xf32>
    %c0_9 = arith.constant 0 : index
    %c3 = arith.constant 3 : index
    %c0_10 = arith.constant 0 : index
    %c0_11 = arith.constant 0 : index
    %6 = vector.load %arg2[%c0_9, %c3, %c0_10, %c0_11] : memref<2x4x2x128xf32, #tpu.memory_space<vmem>>, vector<1x1x2x128xf32>
    %7 = vector.shape_cast %6 : vector<1x1x2x128xf32> to vector<2x128xf32>
    %c0_12 = arith.constant 0 : index
    %8 = memref.load %arg3[%c0_12] : memref<32xf32, #tpu.memory_space<smem>>
    %9 = vector.broadcast %8 : f32 to vector<2x128xf32>
    %10 = arith.mulf %1, %9 : vector<2x128xf32>
    %c0_13 = arith.constant 0 : index
    %11 = memref.load %arg4[%c0_13] : memref<8xf32, #tpu.memory_space<smem>>
    %12 = vector.broadcast %11 : f32 to vector<2x128xf32>
    %13 = arith.addf %10, %12 : vector<2x128xf32>
    %c1_14 = arith.constant 1 : index
    %14 = memref.load %arg3[%c1_14] : memref<32xf32, #tpu.memory_space<smem>>
    %15 = vector.broadcast %14 : f32 to vector<2x128xf32>
    %16 = arith.mulf %3, %15 : vector<2x128xf32>
    %17 = arith.addf %13, %16 : vector<2x128xf32>
    %c2_15 = arith.constant 2 : index
    %18 = memref.load %arg3[%c2_15] : memref<32xf32, #tpu.memory_space<smem>>
    %19 = vector.broadcast %18 : f32 to vector<2x128xf32>
    %20 = arith.mulf %5, %19 : vector<2x128xf32>
    %21 = arith.addf %17, %20 : vector<2x128xf32>
    %c3_16 = arith.constant 3 : index
    %22 = memref.load %arg3[%c3_16] : memref<32xf32, #tpu.memory_space<smem>>
    %23 = vector.broadcast %22 : f32 to vector<2x128xf32>
    %24 = arith.mulf %7, %23 : vector<2x128xf32>
    %25 = arith.addf %21, %24 : vector<2x128xf32>
    %c0_17 = arith.constant 0 : index
    %c0_18 = arith.constant 0 : index
    %c0_19 = arith.constant 0 : index
    %c0_20 = arith.constant 0 : index
    %26 = vector.load %arg5[%c0_17, %c0_18, %c0_19, %c0_20] : memref<2x8x2x128xf32, #tpu.memory_space<vmem>>, vector<1x1x2x128xf32>
    %27 = vector.shape_cast %26 : vector<1x1x2x128xf32> to vector<2x128xf32>
    %28 = vector.shape_cast %25 : vector<2x128xf32> to vector<1x1x2x128xf32>
    tpu.vector_store %arg5[%c0_17, %c0_18, %c0_19, %c0_20], %28 {strides = array<i32>} : memref<2x8x2x128xf32, #tpu.memory_space<vmem>>, vector<1x1x2x128xf32>,
    %c4 = arith.constant 4 : index
    %29 = memref.load %arg3[%c4] : memref<32xf32, #tpu.memory_space<smem>>
    %30 = vector.broadcast %29 : f32 to vector<2x128xf32>
    %31 = arith.mulf %1, %30 : vector<2x128xf32>
    %c1_21 = arith.constant 1 : index
    %32 = memref.load %arg4[%c1_21] : memref<8xf32, #tpu.memory_space<smem>>
    %33 = vector.broadcast %32 : f32 to vector<2x128xf32>
    %34 = arith.addf %31, %33 : vector<2x128xf32>
    %c5 = arith.constant 5 : index
    %35 = memref.load %arg3[%c5] : memref<32xf32, #tpu.memory_space<smem>>
    %36 = vector.broadcast %35 : f32 to vector<2x128xf32>
    %37 = arith.mulf %3, %36 : vector<2x128xf32>
    %38 = arith.addf %34, %37 : vector<2x128xf32>
    %c6 = arith.constant 6 : index
    %39 = memref.load %arg3[%c6] : memref<32xf32, #tpu.memory_space<smem>>
    %40 = vector.broadcast %39 : f32 to vector<2x128xf32>
    %41 = arith.mulf %5, %40 : vector<2x128xf32>
    %42 = arith.addf %38, %41 : vector<2x128xf32>
    %c7 = arith.constant 7 : index
    %43 = memref.load %arg3[%c7] : memref<32xf32, #tpu.memory_space<smem>>
    %44 = vector.broadcast %43 : f32 to vector<2x128xf32>
    %45 = arith.mulf %7, %44 : vector<2x128xf32>
    %46 = arith.addf %42, %45 : vector<2x128xf32>
    %c0_22 = arith.constant 0 : index
    %c1_23 = arith.constant 1 : index
    %c0_24 = arith.constant 0 : index
    %c0_25 = arith.constant 0 : index
    %47 = vector.load %arg5[%c0_22, %c1_23, %c0_24, %c0_25] : memref<2x8x2x128xf32, #tpu.memory_space<vmem>>, vector<1x1x2x128xf32>
    %48 = vector.shape_cast %47 : vector<1x1x2x128xf32> to vector<2x128xf32>
    %49 = vector.shape_cast %46 : vector<2x128xf32> to vector<1x1x2x128xf32>
    tpu.vector_store %arg5[%c0_22, %c1_23, %c0_24, %c0_25], %49 {strides = array<i32>} : memref<2x8x2x128xf32, #tpu.memory_space<vmem>>, vector<1x1x2x128xf32>,
    %c8 = arith.constant 8 : index
    %50 = memref.load %arg3[%c8] : memref<32xf32, #tpu.memory_space<smem>>
    %51 = vector.broadcast %50 : f32 to vector<2x128xf32>
    %52 = arith.mulf %1, %51 : vector<2x128xf32>
    %c2_26 = arith.constant 2 : index
    %53 = memref.load %arg4[%c2_26] : memref<8xf32, #tpu.memory_space<smem>>
    %54 = vector.broadcast %53 : f32 to vector<2x128xf32>
    %55 = arith.addf %52, %54 : vector<2x128xf32>
    %c9 = arith.constant 9 : index
    %56 = memref.load %arg3[%c9] : memref<32xf32, #tpu.memory_space<smem>>
    %57 = vector.broadcast %56 : f32 to vector<2x128xf32>
    %58 = arith.mulf %3, %57 : vector<2x128xf32>
    %59 = arith.addf %55, %58 : vector<2x128xf32>
    %c10 = arith.constant 10 : index
    %60 = memref.load %arg3[%c10] : memref<32xf32, #tpu.memory_space<smem>>
    %61 = vector.broadcast %60 : f32 to vector<2x128xf32>
    %62 = arith.mulf %5, %61 : vector<2x128xf32>
    %63 = arith.addf %59, %62 : vector<2x128xf32>
    %c11 = arith.constant 11 : index
    %64 = memref.load %arg3[%c11] : memref<32xf32, #tpu.memory_space<smem>>
    %65 = vector.broadcast %64 : f32 to vector<2x128xf32>
    %66 = arith.mulf %7, %65 : vector<2x128xf32>
    %67 = arith.addf %63, %66 : vector<2x128xf32>
    %c0_27 = arith.constant 0 : index
    %c2_28 = arith.constant 2 : index
    %c0_29 = arith.constant 0 : index
    %c0_30 = arith.constant 0 : index
    %68 = vector.load %arg5[%c0_27, %c2_28, %c0_29, %c0_30] : memref<2x8x2x128xf32, #tpu.memory_space<vmem>>, vector<1x1x2x128xf32>
    %69 = vector.shape_cast %68 : vector<1x1x2x128xf32> to vector<2x128xf32>
    %70 = vector.shape_cast %67 : vector<2x128xf32> to vector<1x1x2x128xf32>
    tpu.vector_store %arg5[%c0_27, %c2_28, %c0_29, %c0_30], %70 {strides = array<i32>} : memref<2x8x2x128xf32, #tpu.memory_space<vmem>>, vector<1x1x2x128xf32>,
    %c12 = arith.constant 12 : index
    %71 = memref.load %arg3[%c12] : memref<32xf32, #tpu.memory_space<smem>>
    %72 = vector.broadcast %71 : f32 to vector<2x128xf32>
    %73 = arith.mulf %1, %72 : vector<2x128xf32>
    %c3_31 = arith.constant 3 : index
    %74 = memref.load %arg4[%c3_31] : memref<8xf32, #tpu.memory_space<smem>>
    %75 = vector.broadcast %74 : f32 to vector<2x128xf32>
    %76 = arith.addf %73, %75 : vector<2x128xf32>
    %c13 = arith.constant 13 : index
    %77 = memref.load %arg3[%c13] : memref<32xf32, #tpu.memory_space<smem>>
    %78 = vector.broadcast %77 : f32 to vector<2x128xf32>
    %79 = arith.mulf %3, %78 : vector<2x128xf32>
    %80 = arith.addf %76, %79 : vector<2x128xf32>
    %c14 = arith.constant 14 : index
    %81 = memref.load %arg3[%c14] : memref<32xf32, #tpu.memory_space<smem>>
    %82 = vector.broadcast %81 : f32 to vector<2x128xf32>
    %83 = arith.mulf %5, %82 : vector<2x128xf32>
    %84 = arith.addf %80, %83 : vector<2x128xf32>
    %c15 = arith.constant 15 : index
    %85 = memref.load %arg3[%c15] : memref<32xf32, #tpu.memory_space<smem>>
    %86 = vector.broadcast %85 : f32 to vector<2x128xf32>
    %87 = arith.mulf %7, %86 : vector<2x128xf32>
    %88 = arith.addf %84, %87 : vector<2x128xf32>
    %c0_32 = arith.constant 0 : index
    %c3_33 = arith.constant 3 : index
    %c0_34 = arith.constant 0 : index
    %c0_35 = arith.constant 0 : index
    %89 = vector.load %arg5[%c0_32, %c3_33, %c0_34, %c0_35] : memref<2x8x2x128xf32, #tpu.memory_space<vmem>>, vector<1x1x2x128xf32>
    %90 = vector.shape_cast %89 : vector<1x1x2x128xf32> to vector<2x128xf32>
    %91 = vector.shape_cast %88 : vector<2x128xf32> to vector<1x1x2x128xf32>
    tpu.vector_store %arg5[%c0_32, %c3_33, %c0_34, %c0_35], %91 {strides = array<i32>} : memref<2x8x2x128xf32, #tpu.memory_space<vmem>>, vector<1x1x2x128xf32>,
    %c16 = arith.constant 16 : index
    %92 = memref.load %arg3[%c16] : memref<32xf32, #tpu.memory_space<smem>>
    %93 = vector.broadcast %92 : f32 to vector<2x128xf32>
    %94 = arith.mulf %1, %93 : vector<2x128xf32>
    %c4_36 = arith.constant 4 : index
    %95 = memref.load %arg4[%c4_36] : memref<8xf32, #tpu.memory_space<smem>>
    %96 = vector.broadcast %95 : f32 to vector<2x128xf32>
    %97 = arith.addf %94, %96 : vector<2x128xf32>
    %c17 = arith.constant 17 : index
    %98 = memref.load %arg3[%c17] : memref<32xf32, #tpu.memory_space<smem>>
    %99 = vector.broadcast %98 : f32 to vector<2x128xf32>
    %100 = arith.mulf %3, %99 : vector<2x128xf32>
    %101 = arith.addf %97, %100 : vector<2x128xf32>
    %c18 = arith.constant 18 : index
    %102 = memref.load %arg3[%c18] : memref<32xf32, #tpu.memory_space<smem>>
    %103 = vector.broadcast %102 : f32 to vector<2x128xf32>
    %104 = arith.mulf %5, %103 : vector<2x128xf32>
    %105 = arith.addf %101, %104 : vector<2x128xf32>
    %c19 = arith.constant 19 : index
    %106 = memref.load %arg3[%c19] : memref<32xf32, #tpu.memory_space<smem>>
    %107 = vector.broadcast %106 : f32 to vector<2x128xf32>
    %108 = arith.mulf %7, %107 : vector<2x128xf32>
    %109 = arith.addf %105, %108 : vector<2x128xf32>
    %c0_37 = arith.constant 0 : index
    %c4_38 = arith.constant 4 : index
    %c0_39 = arith.constant 0 : index
    %c0_40 = arith.constant 0 : index
    %110 = vector.load %arg5[%c0_37, %c4_38, %c0_39, %c0_40] : memref<2x8x2x128xf32, #tpu.memory_space<vmem>>, vector<1x1x2x128xf32>
    %111 = vector.shape_cast %110 : vector<1x1x2x128xf32> to vector<2x128xf32>
    %112 = vector.shape_cast %109 : vector<2x128xf32> to vector<1x1x2x128xf32>
    tpu.vector_store %arg5[%c0_37, %c4_38, %c0_39, %c0_40], %112 {strides = array<i32>} : memref<2x8x2x128xf32, #tpu.memory_space<vmem>>, vector<1x1x2x128xf32>,
    %c20 = arith.constant 20 : index
    %113 = memref.load %arg3[%c20] : memref<32xf32, #tpu.memory_space<smem>>
    %114 = vector.broadcast %113 : f32 to vector<2x128xf32>
    %115 = arith.mulf %1, %114 : vector<2x128xf32>
    %c5_41 = arith.constant 5 : index
    %116 = memref.load %arg4[%c5_41] : memref<8xf32, #tpu.memory_space<smem>>
    %117 = vector.broadcast %116 : f32 to vector<2x128xf32>
    %118 = arith.addf %115, %117 : vector<2x128xf32>
    %c21 = arith.constant 21 : index
    %119 = memref.load %arg3[%c21] : memref<32xf32, #tpu.memory_space<smem>>
    %120 = vector.broadcast %119 : f32 to vector<2x128xf32>
    %121 = arith.mulf %3, %120 : vector<2x128xf32>
    %122 = arith.addf %118, %121 : vector<2x128xf32>
    %c22 = arith.constant 22 : index
    %123 = memref.load %arg3[%c22] : memref<32xf32, #tpu.memory_space<smem>>
    %124 = vector.broadcast %123 : f32 to vector<2x128xf32>
    %125 = arith.mulf %5, %124 : vector<2x128xf32>
    %126 = arith.addf %122, %125 : vector<2x128xf32>
    %c23 = arith.constant 23 : index
    %127 = memref.load %arg3[%c23] : memref<32xf32, #tpu.memory_space<smem>>
    %128 = vector.broadcast %127 : f32 to vector<2x128xf32>
    %129 = arith.mulf %7, %128 : vector<2x128xf32>
    %130 = arith.addf %126, %129 : vector<2x128xf32>
    %c0_42 = arith.constant 0 : index
    %c5_43 = arith.constant 5 : index
    %c0_44 = arith.constant 0 : index
    %c0_45 = arith.constant 0 : index
    %131 = vector.load %arg5[%c0_42, %c5_43, %c0_44, %c0_45] : memref<2x8x2x128xf32, #tpu.memory_space<vmem>>, vector<1x1x2x128xf32>
    %132 = vector.shape_cast %131 : vector<1x1x2x128xf32> to vector<2x128xf32>
    %133 = vector.shape_cast %130 : vector<2x128xf32> to vector<1x1x2x128xf32>
    tpu.vector_store %arg5[%c0_42, %c5_43, %c0_44, %c0_45], %133 {strides = array<i32>} : memref<2x8x2x128xf32, #tpu.memory_space<vmem>>, vector<1x1x2x128xf32>,
    %c24 = arith.constant 24 : index
    %134 = memref.load %arg3[%c24] : memref<32xf32, #tpu.memory_space<smem>>
    %135 = vector.broadcast %134 : f32 to vector<2x128xf32>
    %136 = arith.mulf %1, %135 : vector<2x128xf32>
    %c6_46 = arith.constant 6 : index
    %137 = memref.load %arg4[%c6_46] : memref<8xf32, #tpu.memory_space<smem>>
    %138 = vector.broadcast %137 : f32 to vector<2x128xf32>
    %139 = arith.addf %136, %138 : vector<2x128xf32>
    %c25 = arith.constant 25 : index
    %140 = memref.load %arg3[%c25] : memref<32xf32, #tpu.memory_space<smem>>
    %141 = vector.broadcast %140 : f32 to vector<2x128xf32>
    %142 = arith.mulf %3, %141 : vector<2x128xf32>
    %143 = arith.addf %139, %142 : vector<2x128xf32>
    %c26 = arith.constant 26 : index
    %144 = memref.load %arg3[%c26] : memref<32xf32, #tpu.memory_space<smem>>
    %145 = vector.broadcast %144 : f32 to vector<2x128xf32>
    %146 = arith.mulf %5, %145 : vector<2x128xf32>
    %147 = arith.addf %143, %146 : vector<2x128xf32>
    %c27 = arith.constant 27 : index
    %148 = memref.load %arg3[%c27] : memref<32xf32, #tpu.memory_space<smem>>
    %149 = vector.broadcast %148 : f32 to vector<2x128xf32>
    %150 = arith.mulf %7, %149 : vector<2x128xf32>
    %151 = arith.addf %147, %150 : vector<2x128xf32>
    %c0_47 = arith.constant 0 : index
    %c6_48 = arith.constant 6 : index
    %c0_49 = arith.constant 0 : index
    %c0_50 = arith.constant 0 : index
    %152 = vector.load %arg5[%c0_47, %c6_48, %c0_49, %c0_50] : memref<2x8x2x128xf32, #tpu.memory_space<vmem>>, vector<1x1x2x128xf32>
    %153 = vector.shape_cast %152 : vector<1x1x2x128xf32> to vector<2x128xf32>
    %154 = vector.shape_cast %151 : vector<2x128xf32> to vector<1x1x2x128xf32>
    tpu.vector_store %arg5[%c0_47, %c6_48, %c0_49, %c0_50], %154 {strides = array<i32>} : memref<2x8x2x128xf32, #tpu.memory_space<vmem>>, vector<1x1x2x128xf32>,
    %c28 = arith.constant 28 : index
    %155 = memref.load %arg3[%c28] : memref<32xf32, #tpu.memory_space<smem>>
    %156 = vector.broadcast %155 : f32 to vector<2x128xf32>
    %157 = arith.mulf %1, %156 : vector<2x128xf32>
    %c7_51 = arith.constant 7 : index
    %158 = memref.load %arg4[%c7_51] : memref<8xf32, #tpu.memory_space<smem>>
    %159 = vector.broadcast %158 : f32 to vector<2x128xf32>
    %160 = arith.addf %157, %159 : vector<2x128xf32>
    %c29 = arith.constant 29 : index
    %161 = memref.load %arg3[%c29] : memref<32xf32, #tpu.memory_space<smem>>
    %162 = vector.broadcast %161 : f32 to vector<2x128xf32>
    %163 = arith.mulf %3, %162 : vector<2x128xf32>
    %164 = arith.addf %160, %163 : vector<2x128xf32>
    %c30 = arith.constant 30 : index
    %165 = memref.load %arg3[%c30] : memref<32xf32, #tpu.memory_space<smem>>
    %166 = vector.broadcast %165 : f32 to vector<2x128xf32>
    %167 = arith.mulf %5, %166 : vector<2x128xf32>
    %168 = arith.addf %164, %167 : vector<2x128xf32>
    %c31 = arith.constant 31 : index
    %169 = memref.load %arg3[%c31] : memref<32xf32, #tpu.memory_space<smem>>
    %170 = vector.broadcast %169 : f32 to vector<2x128xf32>
    %171 = arith.mulf %7, %170 : vector<2x128xf32>
    %172 = arith.addf %168, %171 : vector<2x128xf32>
    %c0_52 = arith.constant 0 : index
    %c7_53 = arith.constant 7 : index
    %c0_54 = arith.constant 0 : index
    %c0_55 = arith.constant 0 : index
    %173 = vector.load %arg5[%c0_52, %c7_53, %c0_54, %c0_55] : memref<2x8x2x128xf32, #tpu.memory_space<vmem>>, vector<1x1x2x128xf32>
    %174 = vector.shape_cast %173 : vector<1x1x2x128xf32> to vector<2x128xf32>
    %175 = vector.shape_cast %172 : vector<2x128xf32> to vector<1x1x2x128xf32>
    tpu.vector_store %arg5[%c0_52, %c7_53, %c0_54, %c0_55], %175 {strides = array<i32>} : memref<2x8x2x128xf32, #tpu.memory_space<vmem>>, vector<1x1x2x128xf32>,
    %c1_56 = arith.constant 1 : index
    %c0_57 = arith.constant 0 : index
    %c0_58 = arith.constant 0 : index
    %c0_59 = arith.constant 0 : index
    %176 = vector.load %arg2[%c1_56, %c0_57, %c0_58, %c0_59] : memref<2x4x2x128xf32, #tpu.memory_space<vmem>>, vector<1x1x2x128xf32>
    %177 = vector.shape_cast %176 : vector<1x1x2x128xf32> to vector<2x128xf32>
    %c1_60 = arith.constant 1 : index
    %c1_61 = arith.constant 1 : index
    %c0_62 = arith.constant 0 : index
    %c0_63 = arith.constant 0 : index
    %178 = vector.load %arg2[%c1_60, %c1_61, %c0_62, %c0_63] : memref<2x4x2x128xf32, #tpu.memory_space<vmem>>, vector<1x1x2x128xf32>
    %179 = vector.shape_cast %178 : vector<1x1x2x128xf32> to vector<2x128xf32>
    %c1_64 = arith.constant 1 : index
    %c2_65 = arith.constant 2 : index
    %c0_66 = arith.constant 0 : index
    %c0_67 = arith.constant 0 : index
    %180 = vector.load %arg2[%c1_64, %c2_65, %c0_66, %c0_67] : memref<2x4x2x128xf32, #tpu.memory_space<vmem>>, vector<1x1x2x128xf32>
    %181 = vector.shape_cast %180 : vector<1x1x2x128xf32> to vector<2x128xf32>
    %c1_68 = arith.constant 1 : index
    %c3_69 = arith.constant 3 : index
    %c0_70 = arith.constant 0 : index
    %c0_71 = arith.constant 0 : index
    %182 = vector.load %arg2[%c1_68, %c3_69, %c0_70, %c0_71] : memref<2x4x2x128xf32, #tpu.memory_space<vmem>>, vector<1x1x2x128xf32>
    %183 = vector.shape_cast %182 : vector<1x1x2x128xf32> to vector<2x128xf32>
    %c0_72 = arith.constant 0 : index
    %184 = memref.load %arg3[%c0_72] : memref<32xf32, #tpu.memory_space<smem>>
    %185 = vector.broadcast %184 : f32 to vector<2x128xf32>
    %186 = arith.mulf %177, %185 : vector<2x128xf32>
    %c0_73 = arith.constant 0 : index
    %187 = memref.load %arg4[%c0_73] : memref<8xf32, #tpu.memory_space<smem>>
    %188 = vector.broadcast %187 : f32 to vector<2x128xf32>
    %189 = arith.addf %186, %188 : vector<2x128xf32>
    %c1_74 = arith.constant 1 : index
    %190 = memref.load %arg3[%c1_74] : memref<32xf32, #tpu.memory_space<smem>>
    %191 = vector.broadcast %190 : f32 to vector<2x128xf32>
    %192 = arith.mulf %179, %191 : vector<2x128xf32>
    %193 = arith.addf %189, %192 : vector<2x128xf32>
    %c2_75 = arith.constant 2 : index
    %194 = memref.load %arg3[%c2_75] : memref<32xf32, #tpu.memory_space<smem>>
    %195 = vector.broadcast %194 : f32 to vector<2x128xf32>
    %196 = arith.mulf %181, %195 : vector<2x128xf32>
    %197 = arith.addf %193, %196 : vector<2x128xf32>
    %c3_76 = arith.constant 3 : index
    %198 = memref.load %arg3[%c3_76] : memref<32xf32, #tpu.memory_space<smem>>
    %199 = vector.broadcast %198 : f32 to vector<2x128xf32>
    %200 = arith.mulf %183, %199 : vector<2x128xf32>
    %201 = arith.addf %197, %200 : vector<2x128xf32>
    %c1_77 = arith.constant 1 : index
    %c0_78 = arith.constant 0 : index
    %c0_79 = arith.constant 0 : index
    %c0_80 = arith.constant 0 : index
    %202 = vector.load %arg5[%c1_77, %c0_78, %c0_79, %c0_80] : memref<2x8x2x128xf32, #tpu.memory_space<vmem>>, vector<1x1x2x128xf32>
    %203 = vector.shape_cast %202 : vector<1x1x2x128xf32> to vector<2x128xf32>
    %204 = vector.shape_cast %201 : vector<2x128xf32> to vector<1x1x2x128xf32>
    tpu.vector_store %arg5[%c1_77, %c0_78, %c0_79, %c0_80], %204 {strides = array<i32>} : memref<2x8x2x128xf32, #tpu.memory_space<vmem>>, vector<1x1x2x128xf32>,
    %c4_81 = arith.constant 4 : index
    %205 = memref.load %arg3[%c4_81] : memref<32xf32, #tpu.memory_space<smem>>
    %206 = vector.broadcast %205 : f32 to vector<2x128xf32>
    %207 = arith.mulf %177, %206 : vector<2x128xf32>
    %c1_82 = arith.constant 1 : index
    %208 = memref.load %arg4[%c1_82] : memref<8xf32, #tpu.memory_space<smem>>
    %209 = vector.broadcast %208 : f32 to vector<2x128xf32>
    %210 = arith.addf %207, %209 : vector<2x128xf32>
    %c5_83 = arith.constant 5 : index
    %211 = memref.load %arg3[%c5_83] : memref<32xf32, #tpu.memory_space<smem>>
    %212 = vector.broadcast %211 : f32 to vector<2x128xf32>
    %213 = arith.mulf %179, %212 : vector<2x128xf32>
    %214 = arith.addf %210, %213 : vector<2x128xf32>
    %c6_84 = arith.constant 6 : index
    %215 = memref.load %arg3[%c6_84] : memref<32xf32, #tpu.memory_space<smem>>
    %216 = vector.broadcast %215 : f32 to vector<2x128xf32>
    %217 = arith.mulf %181, %216 : vector<2x128xf32>
    %218 = arith.addf %214, %217 : vector<2x128xf32>
    %c7_85 = arith.constant 7 : index
    %219 = memref.load %arg3[%c7_85] : memref<32xf32, #tpu.memory_space<smem>>
    %220 = vector.broadcast %219 : f32 to vector<2x128xf32>
    %221 = arith.mulf %183, %220 : vector<2x128xf32>
    %222 = arith.addf %218, %221 : vector<2x128xf32>
    %c1_86 = arith.constant 1 : index
    %c1_87 = arith.constant 1 : index
    %c0_88 = arith.constant 0 : index
    %c0_89 = arith.constant 0 : index
    %223 = vector.load %arg5[%c1_86, %c1_87, %c0_88, %c0_89] : memref<2x8x2x128xf32, #tpu.memory_space<vmem>>, vector<1x1x2x128xf32>
    %224 = vector.shape_cast %223 : vector<1x1x2x128xf32> to vector<2x128xf32>
    %225 = vector.shape_cast %222 : vector<2x128xf32> to vector<1x1x2x128xf32>
    tpu.vector_store %arg5[%c1_86, %c1_87, %c0_88, %c0_89], %225 {strides = array<i32>} : memref<2x8x2x128xf32, #tpu.memory_space<vmem>>, vector<1x1x2x128xf32>,
    %c8_90 = arith.constant 8 : index
    %226 = memref.load %arg3[%c8_90] : memref<32xf32, #tpu.memory_space<smem>>
    %227 = vector.broadcast %226 : f32 to vector<2x128xf32>
    %228 = arith.mulf %177, %227 : vector<2x128xf32>
    %c2_91 = arith.constant 2 : index
    %229 = memref.load %arg4[%c2_91] : memref<8xf32, #tpu.memory_space<smem>>
    %230 = vector.broadcast %229 : f32 to vector<2x128xf32>
    %231 = arith.addf %228, %230 : vector<2x128xf32>
    %c9_92 = arith.constant 9 : index
    %232 = memref.load %arg3[%c9_92] : memref<32xf32, #tpu.memory_space<smem>>
    %233 = vector.broadcast %232 : f32 to vector<2x128xf32>
    %234 = arith.mulf %179, %233 : vector<2x128xf32>
    %235 = arith.addf %231, %234 : vector<2x128xf32>
    %c10_93 = arith.constant 10 : index
    %236 = memref.load %arg3[%c10_93] : memref<32xf32, #tpu.memory_space<smem>>
    %237 = vector.broadcast %236 : f32 to vector<2x128xf32>
    %238 = arith.mulf %181, %237 : vector<2x128xf32>
    %239 = arith.addf %235, %238 : vector<2x128xf32>
    %c11_94 = arith.constant 11 : index
    %240 = memref.load %arg3[%c11_94] : memref<32xf32, #tpu.memory_space<smem>>
    %241 = vector.broadcast %240 : f32 to vector<2x128xf32>
    %242 = arith.mulf %183, %241 : vector<2x128xf32>
    %243 = arith.addf %239, %242 : vector<2x128xf32>
    %c1_95 = arith.constant 1 : index
    %c2_96 = arith.constant 2 : index
    %c0_97 = arith.constant 0 : index
    %c0_98 = arith.constant 0 : index
    %244 = vector.load %arg5[%c1_95, %c2_96, %c0_97, %c0_98] : memref<2x8x2x128xf32, #tpu.memory_space<vmem>>, vector<1x1x2x128xf32>
    %245 = vector.shape_cast %244 : vector<1x1x2x128xf32> to vector<2x128xf32>
    %246 = vector.shape_cast %243 : vector<2x128xf32> to vector<1x1x2x128xf32>
    tpu.vector_store %arg5[%c1_95, %c2_96, %c0_97, %c0_98], %246 {strides = array<i32>} : memref<2x8x2x128xf32, #tpu.memory_space<vmem>>, vector<1x1x2x128xf32>,
    %c12_99 = arith.constant 12 : index
    %247 = memref.load %arg3[%c12_99] : memref<32xf32, #tpu.memory_space<smem>>
    %248 = vector.broadcast %247 : f32 to vector<2x128xf32>
    %249 = arith.mulf %177, %248 : vector<2x128xf32>
    %c3_100 = arith.constant 3 : index
    %250 = memref.load %arg4[%c3_100] : memref<8xf32, #tpu.memory_space<smem>>
    %251 = vector.broadcast %250 : f32 to vector<2x128xf32>
    %252 = arith.addf %249, %251 : vector<2x128xf32>
    %c13_101 = arith.constant 13 : index
    %253 = memref.load %arg3[%c13_101] : memref<32xf32, #tpu.memory_space<smem>>
    %254 = vector.broadcast %253 : f32 to vector<2x128xf32>
    %255 = arith.mulf %179, %254 : vector<2x128xf32>
    %256 = arith.addf %252, %255 : vector<2x128xf32>
    %c14_102 = arith.constant 14 : index
    %257 = memref.load %arg3[%c14_102] : memref<32xf32, #tpu.memory_space<smem>>
    %258 = vector.broadcast %257 : f32 to vector<2x128xf32>
    %259 = arith.mulf %181, %258 : vector<2x128xf32>
    %260 = arith.addf %256, %259 : vector<2x128xf32>
    %c15_103 = arith.constant 15 : index
    %261 = memref.load %arg3[%c15_103] : memref<32xf32, #tpu.memory_space<smem>>
    %262 = vector.broadcast %261 : f32 to vector<2x128xf32>
    %263 = arith.mulf %183, %262 : vector<2x128xf32>
    %264 = arith.addf %260, %263 : vector<2x128xf32>
    %c1_104 = arith.constant 1 : index
    %c3_105 = arith.constant 3 : index
    %c0_106 = arith.constant 0 : index
    %c0_107 = arith.constant 0 : index
    %265 = vector.load %arg5[%c1_104, %c3_105, %c0_106, %c0_107] : memref<2x8x2x128xf32, #tpu.memory_space<vmem>>, vector<1x1x2x128xf32>
    %266 = vector.shape_cast %265 : vector<1x1x2x128xf32> to vector<2x128xf32>
    %267 = vector.shape_cast %264 : vector<2x128xf32> to vector<1x1x2x128xf32>
    tpu.vector_store %arg5[%c1_104, %c3_105, %c0_106, %c0_107], %267 {strides = array<i32>} : memref<2x8x2x128xf32, #tpu.memory_space<vmem>>, vector<1x1x2x128xf32>,
    %c16_108 = arith.constant 16 : index
    %268 = memref.load %arg3[%c16_108] : memref<32xf32, #tpu.memory_space<smem>>
    %269 = vector.broadcast %268 : f32 to vector<2x128xf32>
    %270 = arith.mulf %177, %269 : vector<2x128xf32>
    %c4_109 = arith.constant 4 : index
    %271 = memref.load %arg4[%c4_109] : memref<8xf32, #tpu.memory_space<smem>>
    %272 = vector.broadcast %271 : f32 to vector<2x128xf32>
    %273 = arith.addf %270, %272 : vector<2x128xf32>
    %c17_110 = arith.constant 17 : index
    %274 = memref.load %arg3[%c17_110] : memref<32xf32, #tpu.memory_space<smem>>
    %275 = vector.broadcast %274 : f32 to vector<2x128xf32>
    %276 = arith.mulf %179, %275 : vector<2x128xf32>
    %277 = arith.addf %273, %276 : vector<2x128xf32>
    %c18_111 = arith.constant 18 : index
    %278 = memref.load %arg3[%c18_111] : memref<32xf32, #tpu.memory_space<smem>>
    %279 = vector.broadcast %278 : f32 to vector<2x128xf32>
    %280 = arith.mulf %181, %279 : vector<2x128xf32>
    %281 = arith.addf %277, %280 : vector<2x128xf32>
    %c19_112 = arith.constant 19 : index
    %282 = memref.load %arg3[%c19_112] : memref<32xf32, #tpu.memory_space<smem>>
    %283 = vector.broadcast %282 : f32 to vector<2x128xf32>
    %284 = arith.mulf %183, %283 : vector<2x128xf32>
    %285 = arith.addf %281, %284 : vector<2x128xf32>
    %c1_113 = arith.constant 1 : index
    %c4_114 = arith.constant 4 : index
    %c0_115 = arith.constant 0 : index
    %c0_116 = arith.constant 0 : index
    %286 = vector.load %arg5[%c1_113, %c4_114, %c0_115, %c0_116] : memref<2x8x2x128xf32, #tpu.memory_space<vmem>>, vector<1x1x2x128xf32>
    %287 = vector.shape_cast %286 : vector<1x1x2x128xf32> to vector<2x128xf32>
    %288 = vector.shape_cast %285 : vector<2x128xf32> to vector<1x1x2x128xf32>
    tpu.vector_store %arg5[%c1_113, %c4_114, %c0_115, %c0_116], %288 {strides = array<i32>} : memref<2x8x2x128xf32, #tpu.memory_space<vmem>>, vector<1x1x2x128xf32>,
    %c20_117 = arith.constant 20 : index
    %289 = memref.load %arg3[%c20_117] : memref<32xf32, #tpu.memory_space<smem>>
    %290 = vector.broadcast %289 : f32 to vector<2x128xf32>
    %291 = arith.mulf %177, %290 : vector<2x128xf32>
    %c5_118 = arith.constant 5 : index
    %292 = memref.load %arg4[%c5_118] : memref<8xf32, #tpu.memory_space<smem>>
    %293 = vector.broadcast %292 : f32 to vector<2x128xf32>
    %294 = arith.addf %291, %293 : vector<2x128xf32>
    %c21_119 = arith.constant 21 : index
    %295 = memref.load %arg3[%c21_119] : memref<32xf32, #tpu.memory_space<smem>>
    %296 = vector.broadcast %295 : f32 to vector<2x128xf32>
    %297 = arith.mulf %179, %296 : vector<2x128xf32>
    %298 = arith.addf %294, %297 : vector<2x128xf32>
    %c22_120 = arith.constant 22 : index
    %299 = memref.load %arg3[%c22_120] : memref<32xf32, #tpu.memory_space<smem>>
    %300 = vector.broadcast %299 : f32 to vector<2x128xf32>
    %301 = arith.mulf %181, %300 : vector<2x128xf32>
    %302 = arith.addf %298, %301 : vector<2x128xf32>
    %c23_121 = arith.constant 23 : index
    %303 = memref.load %arg3[%c23_121] : memref<32xf32, #tpu.memory_space<smem>>
    %304 = vector.broadcast %303 : f32 to vector<2x128xf32>
    %305 = arith.mulf %183, %304 : vector<2x128xf32>
    %306 = arith.addf %302, %305 : vector<2x128xf32>
    %c1_122 = arith.constant 1 : index
    %c5_123 = arith.constant 5 : index
    %c0_124 = arith.constant 0 : index
    %c0_125 = arith.constant 0 : index
    %307 = vector.load %arg5[%c1_122, %c5_123, %c0_124, %c0_125] : memref<2x8x2x128xf32, #tpu.memory_space<vmem>>, vector<1x1x2x128xf32>
    %308 = vector.shape_cast %307 : vector<1x1x2x128xf32> to vector<2x128xf32>
    %309 = vector.shape_cast %306 : vector<2x128xf32> to vector<1x1x2x128xf32>
    tpu.vector_store %arg5[%c1_122, %c5_123, %c0_124, %c0_125], %309 {strides = array<i32>} : memref<2x8x2x128xf32, #tpu.memory_space<vmem>>, vector<1x1x2x128xf32>,
    %c24_126 = arith.constant 24 : index
    %310 = memref.load %arg3[%c24_126] : memref<32xf32, #tpu.memory_space<smem>>
    %311 = vector.broadcast %310 : f32 to vector<2x128xf32>
    %312 = arith.mulf %177, %311 : vector<2x128xf32>
    %c6_127 = arith.constant 6 : index
    %313 = memref.load %arg4[%c6_127] : memref<8xf32, #tpu.memory_space<smem>>
    %314 = vector.broadcast %313 : f32 to vector<2x128xf32>
    %315 = arith.addf %312, %314 : vector<2x128xf32>
    %c25_128 = arith.constant 25 : index
    %316 = memref.load %arg3[%c25_128] : memref<32xf32, #tpu.memory_space<smem>>
    %317 = vector.broadcast %316 : f32 to vector<2x128xf32>
    %318 = arith.mulf %179, %317 : vector<2x128xf32>
    %319 = arith.addf %315, %318 : vector<2x128xf32>
    %c26_129 = arith.constant 26 : index
    %320 = memref.load %arg3[%c26_129] : memref<32xf32, #tpu.memory_space<smem>>
    %321 = vector.broadcast %320 : f32 to vector<2x128xf32>
    %322 = arith.mulf %181, %321 : vector<2x128xf32>
    %323 = arith.addf %319, %322 : vector<2x128xf32>
    %c27_130 = arith.constant 27 : index
    %324 = memref.load %arg3[%c27_130] : memref<32xf32, #tpu.memory_space<smem>>
    %325 = vector.broadcast %324 : f32 to vector<2x128xf32>
    %326 = arith.mulf %183, %325 : vector<2x128xf32>
    %327 = arith.addf %323, %326 : vector<2x128xf32>
    %c1_131 = arith.constant 1 : index
    %c6_132 = arith.constant 6 : index
    %c0_133 = arith.constant 0 : index
    %c0_134 = arith.constant 0 : index
    %328 = vector.load %arg5[%c1_131, %c6_132, %c0_133, %c0_134] : memref<2x8x2x128xf32, #tpu.memory_space<vmem>>, vector<1x1x2x128xf32>
    %329 = vector.shape_cast %328 : vector<1x1x2x128xf32> to vector<2x128xf32>
    %330 = vector.shape_cast %327 : vector<2x128xf32> to vector<1x1x2x128xf32>
    tpu.vector_store %arg5[%c1_131, %c6_132, %c0_133, %c0_134], %330 {strides = array<i32>} : memref<2x8x2x128xf32, #tpu.memory_space<vmem>>, vector<1x1x2x128xf32>,
    %c28_135 = arith.constant 28 : index
    %331 = memref.load %arg3[%c28_135] : memref<32xf32, #tpu.memory_space<smem>>
    %332 = vector.broadcast %331 : f32 to vector<2x128xf32>
    %333 = arith.mulf %177, %332 : vector<2x128xf32>
    %c7_136 = arith.constant 7 : index
    %334 = memref.load %arg4[%c7_136] : memref<8xf32, #tpu.memory_space<smem>>
    %335 = vector.broadcast %334 : f32 to vector<2x128xf32>
    %336 = arith.addf %333, %335 : vector<2x128xf32>
    %c29_137 = arith.constant 29 : index
    %337 = memref.load %arg3[%c29_137] : memref<32xf32, #tpu.memory_space<smem>>
    %338 = vector.broadcast %337 : f32 to vector<2x128xf32>
    %339 = arith.mulf %179, %338 : vector<2x128xf32>
    %340 = arith.addf %336, %339 : vector<2x128xf32>
    %c30_138 = arith.constant 30 : index
    %341 = memref.load %arg3[%c30_138] : memref<32xf32, #tpu.memory_space<smem>>
    %342 = vector.broadcast %341 : f32 to vector<2x128xf32>
    %343 = arith.mulf %181, %342 : vector<2x128xf32>
    %344 = arith.addf %340, %343 : vector<2x128xf32>
    %c31_139 = arith.constant 31 : index
    %345 = memref.load %arg3[%c31_139] : memref<32xf32, #tpu.memory_space<smem>>
    %346 = vector.broadcast %345 : f32 to vector<2x128xf32>
    %347 = arith.mulf %183, %346 : vector<2x128xf32>
    %348 = arith.addf %344, %347 : vector<2x128xf32>
    %c1_140 = arith.constant 1 : index
    %c7_141 = arith.constant 7 : index
    %c0_142 = arith.constant 0 : index
    %c0_143 = arith.constant 0 : index
    %349 = vector.load %arg5[%c1_140, %c7_141, %c0_142, %c0_143] : memref<2x8x2x128xf32, #tpu.memory_space<vmem>>, vector<1x1x2x128xf32>
    %350 = vector.shape_cast %349 : vector<1x1x2x128xf32> to vector<2x128xf32>
    %351 = vector.shape_cast %348 : vector<2x128xf32> to vector<1x1x2x128xf32>
    tpu.vector_store %arg5[%c1_140, %c7_141, %c0_142, %c0_143], %351 {strides = array<i32>} : memref<2x8x2x128xf32, #tpu.memory_space<vmem>>, vector<1x1x2x128xf32>,
    return
  }
  func.func @transform_0(%arg0: i32, %arg1: i32) -> (i32, i32, i32, i32) {
    %c0_i32 = arith.constant 0 : i32
    %c0_i32_0 = arith.constant 0 : i32
    %c0_i32_1 = arith.constant 0 : i32
    return %arg0, %c0_i32, %arg1, %c0_i32_0 : i32, i32, i32, i32
  }
  func.func @transform_1(%arg0: i32, %arg1: i32) -> i32 {
    %c0_i32 = arith.constant 0 : i32
    %c0_i32_0 = arith.constant 0 : i32
    return %c0_i32 : i32
  }
  func.func @transform_2(%arg0: i32, %arg1: i32) -> i32 {
    %c0_i32 = arith.constant 0 : i32
    %c0_i32_0 = arith.constant 0 : i32
    return %c0_i32 : i32
  }
  func.func @transform_3(%arg0: i32, %arg1: i32) -> (i32, i32, i32, i32) {
    %c0_i32 = arith.constant 0 : i32
    %c0_i32_0 = arith.constant 0 : i32
    %c0_i32_1 = arith.constant 0 : i32
    return %arg0, %c0_i32, %arg1, %c0_i32_0 : i32, i32, i32, i32
  }
}

</mosaic_0001>

<llo_original>
// kernel: tpu_custom_call.1
$region0: #{tpu_custom_call.1}
  #allocation0 [shape = 'u32[]', space=smem, size = 0x4, offset = 0x4, fixed_abs, tag = 'smem constant byte address 0x4 - core index']
  #allocation1 [shape = 'u32[72,128]{1,0:T(1,128)}', space=vmem, size = 0x9000, scoped, tag = 'internal scratch']
  %s0 = inlined_call_operand.hbm [shape: f32[2,4,2,128], index: 0, kind: input, shape index: {}]
  %s1 = inlined_call_operand.hbm [shape: f32[32], index: 1, kind: input, shape index: {}]
  %s2 = inlined_call_operand.vmem [shape: f32[8], index: 2, kind: input, shape index: {}]
  %s3 = inlined_call_operand.hbm [shape: f32[2,8,2,128], index: 3, kind: output, shape index: {}]
  %s4 = sld [smem:[#allocation0]]
  $region34: #{tpu_custom_call.1} parent=0
    _
  %s6 = ssub.s32 1, %s4
  %s7 = scalar_select 0, %s6, %s4
  $region1: #{tpu_custom_call.1} parent=0
    #allocation2 [shape = 'u8[8192]{0}', space=vmem, size = 0x2000, scoped, tag = 'input window, operand 0, single buffered']
    #allocation3 [shape = 's32[1]{0}', space=sflag, size = 0x4, scoped, tag = 'scoped memory for tpu_custom_call.1']
    #allocation4 [shape = 's32[1]{0}', space=sflag, size = 0x4, scoped, tag = 'scoped memory for tpu_custom_call.1']
    #allocation5 [shape = 's32[1]{0}', space=sflag, size = 0x4, scoped, tag = 'scoped memory for tpu_custom_call.1']
    #allocation6 [shape = 's32[1]{0}', space=sflag, size = 0x4, scoped, tag = 'scoped memory for tpu_custom_call.1']
    #allocation7 [shape = 'u8[512]{0}', space=smem, size = 0x200, scoped, tag = 'input window, operand 1, single buffered']
    #allocation8 [shape = 'u8[512]{0}', space=smem, size = 0x200, scoped, tag = 'input window, operand 2, single buffered']
    #allocation9 [shape = 'u8[16384]{0}', space=vmem, size = 0x4000, scoped, tag = 'output window, operand 0, single buffered']
    %8 = vsyncpa [#allocation3], 0
    %9 = vsyncpa [#allocation5], 0
    %10 = vsyncpa [#allocation6], 0
    %11 = vsyncpa [#allocation4], 0
    // Predicated region
    $region2: #{tpu_custom_call.1} parent=1 // pred_check
      _
    $region3: #{tpu_custom_call.1} parent=1 // pred_check_branch
      %13 = sbr.rel (0) target = $region5
    $region4: #{tpu_custom_call.1} parent=1 // pred_region
      %15 = vsyncadd [#allocation3], 0
      %s16 = sshll.u32 %s0, 4
      %s17 = int_to_ptr.hbm [resolvable:$true] %s16
      %s18 = sshll.u32 [#allocation2], 4
      %s19 = int_to_ptr.vmem [resolvable:$true] %s18
      %24 = dma.hbm_to_vmem [thread:$0]  %s17, 256, %s19, [#allocation3], 32, 32, 2
    $region5: #{tpu_custom_call.1} parent=1 // pred_fallthru
      _
    // Predicated region
    $region6: #{tpu_custom_call.1} parent=1 // pred_check
      _
    $region7: #{tpu_custom_call.1} parent=1 // pred_check_branch
      %26 = sbr.rel (0) target = $region9
    $region8: #{tpu_custom_call.1} parent=1 // pred_region
      %28 = vsyncadd [#allocation5], 0
      %s30 = sshll.u32 %s1, 4
      %s31 = int_to_ptr.hbm [resolvable:$true] %s30
      %33 = dma.hbm_to_smem %s31, 16, [#allocation7], [#allocation5]
    $region9: #{tpu_custom_call.1} parent=1 // pred_fallthru
      _
    // Predicated region
    $region10: #{tpu_custom_call.1} parent=1 // pred_check
      _
    $region11: #{tpu_custom_call.1} parent=1 // pred_check_branch
      %35 = sbr.rel (0) target = $region13
    $region12: #{tpu_custom_call.1} parent=1 // pred_region
      %37 = vsyncadd [#allocation6], 0
      %s39 = sshll.u32 %s2, 4
      %s40 = int_to_ptr.vmem [resolvable:$true] %s39
      %42 = dma.vmem_to_smem %s40, 16, [#allocation8], [#allocation6]
    $region13: #{tpu_custom_call.1} parent=1 // pred_fallthru
      _
    // Predicated region
    $region14: #{tpu_custom_call.1} parent=1 // pred_check
      _
    $region15: #{tpu_custom_call.1} parent=1 // pred_check_branch
      %44 = sbr.rel (0) target = $region17
    $region16: #{tpu_custom_call.1} parent=1 // pred_region
      %46 = dma.done [#allocation3], 256
    $region17: #{tpu_custom_call.1} parent=1 // pred_fallthru
      _
    // Predicated region
    $region18: #{tpu_custom_call.1} parent=1 // pred_check
      _
    $region19: #{tpu_custom_call.1} parent=1 // pred_check_branch
      %48 = sbr.rel (0) target = $region21
    $region20: #{tpu_custom_call.1} parent=1 // pred_region
      %50 = dma.done [#allocation5], 16
    $region21: #{tpu_custom_call.1} parent=1 // pred_fallthru
      _
    // Predicated region
    $region22: #{tpu_custom_call.1} parent=1 // pred_check
      _
    $region23: #{tpu_custom_call.1} parent=1 // pred_check_branch
      %52 = sbr.rel (0) target = $region25
    $region24: #{tpu_custom_call.1} parent=1 // pred_region
      %54 = dma.done [#allocation6], 16
    $region25: #{tpu_custom_call.1} parent=1 // pred_fallthru
      _
    %55 = sfence
    %v56 = vld [vmem:[#allocation2] sm:$0x3]
    %s57 = scalar_lea.vmem [#allocation2], 2
    %v58 = vld [vmem:[%s57] sm:$0x3]
    %s59 = scalar_lea.vmem [#allocation2], 4
    %v60 = vld [vmem:[%s59] sm:$0x3]
    %s61 = scalar_lea.vmem [#allocation2], 6
    %v62 = vld [vmem:[%s61] sm:$0x3]
    %s63 = sld [smem:[#allocation7]]
    %v64 = vstv %s63
    %v65 = vmul.f32 %v56, %v64
    %s66 = sld [smem:[#allocation8]]
    %v67 = vstv %s66
    %v68 = vadd.f32 %v65, %v67
    %s69 = sld [smem:[#allocation7 + $0x1]]
    %v70 = vstv %s69
    %v71 = vmul.f32 %v58, %v70
    %v72 = vadd.f32 %v68, %v71
    %s73 = sld [smem:[#allocation7 + $0x2]]
    %v74 = vstv %s73
    %v75 = vmul.f32 %v60, %v74
    %v76 = vadd.f32 %v72, %v75
    %s77 = sld [smem:[#allocation7 + $0x3]]
    %v78 = vstv %s77
    %v79 = vmul.f32 %v62, %v78
    %v80 = vadd.f32 %v76, %v79
    %81 = vst [vmem:[#allocation9] sm:$0x3] %v80
    %s82 = sld [smem:[#allocation7 + $0x4]]
    %v83 = vstv %s82
    %v84 = vmul.f32 %v56, %v83
    %s85 = sld [smem:[#allocation8 + $0x1]]
    %v86 = vstv %s85
    %v87 = vadd.f32 %v84, %v86
    %s88 = sld [smem:[#allocation7 + $0x5]]
    %v89 = vstv %s88
    %v90 = vmul.f32 %v58, %v89
    %v91 = vadd.f32 %v87, %v90
    %s92 = sld [smem:[#allocation7 + $0x6]]
    %v93 = vstv %s92
    %v94 = vmul.f32 %v60, %v93
    %v95 = vadd.f32 %v91, %v94
    %s96 = sld [smem:[#allocation7 + $0x7]]
    %v97 = vstv %s96
    %v98 = vmul.f32 %v62, %v97
    %v99 = vadd.f32 %v95, %v98
    %s100 = scalar_lea.vmem [#allocation9], 2
    %101 = vst [vmem:[%s100] sm:$0x3] %v99
    %s102 = sld [smem:[#allocation7 + $0x8]]
    %v103 = vstv %s102
    %v104 = vmul.f32 %v56, %v103
    %s105 = sld [smem:[#allocation8 + $0x2]]
    %v106 = vstv %s105
    %v107 = vadd.f32 %v104, %v106
    %s108 = sld [smem:[#allocation7 + $0x9]]
    %v109 = vstv %s108
    %v110 = vmul.f32 %v58, %v109
    %v111 = vadd.f32 %v107, %v110
    %s112 = sld [smem:[#allocation7 + $0xa]]
    %v113 = vstv %s112
    %v114 = vmul.f32 %v60, %v113
    %v115 = vadd.f32 %v111, %v114
    %s116 = sld [smem:[#allocation7 + $0xb]]
    %v117 = vstv %s116
    %v118 = vmul.f32 %v62, %v117
    %v119 = vadd.f32 %v115, %v118
    %s120 = scalar_lea.vmem [#allocation9], 4
    %121 = vst [vmem:[%s120] sm:$0x3] %v119
    %s122 = sld [smem:[#allocation7 + $0xc]]
    %v123 = vstv %s122
    %v124 = vmul.f32 %v56, %v123
    %s125 = sld [smem:[#allocation8 + $0x3]]
    %v126 = vstv %s125
    %v127 = vadd.f32 %v124, %v126
    %s128 = sld [smem:[#allocation7 + $0xd]]
    %v129 = vstv %s128
    %v130 = vmul.f32 %v58, %v129
    %v131 = vadd.f32 %v127, %v130
    %s132 = sld [smem:[#allocation7 + $0xe]]
    %v133 = vstv %s132
    %v134 = vmul.f32 %v60, %v133
    %v135 = vadd.f32 %v131, %v134
    %s136 = sld [smem:[#allocation7 + $0xf]]
    %v137 = vstv %s136
    %v138 = vmul.f32 %v62, %v137
    %v139 = vadd.f32 %v135, %v138
    %s140 = scalar_lea.vmem [#allocation9], 6
    %141 = vst [vmem:[%s140] sm:$0x3] %v139
    %s142 = sld [smem:[#allocation7 + $0x10]]
    %v143 = vstv %s142
    %v144 = vmul.f32 %v56, %v143
    %s145 = sld [smem:[#allocation8 + $0x4]]
    %v146 = vstv %s145
    %v147 = vadd.f32 %v144, %v146
    %s148 = sld [smem:[#allocation7 + $0x11]]
    %v149 = vstv %s148
    %v150 = vmul.f32 %v58, %v149
    %v151 = vadd.f32 %v147, %v150
    %s152 = sld [smem:[#allocation7 + $0x12]]
    %v153 = vstv %s152
    %v154 = vmul.f32 %v60, %v153
    %v155 = vadd.f32 %v151, %v154
    %s156 = sld [smem:[#allocation7 + $0x13]]
    %v157 = vstv %s156
    %v158 = vmul.f32 %v62, %v157
    %v159 = vadd.f32 %v155, %v158
    %s160 = scalar_lea.vmem [#allocation9], 8
    %161 = vst [vmem:[%s160] sm:$0x3] %v159
    %s162 = sld [smem:[#allocation7 + $0x14]]
    %v163 = vstv %s162
    %v164 = vmul.f32 %v56, %v163
    %s165 = sld [smem:[#allocation8 + $0x5]]
    %v166 = vstv %s165
    %v167 = vadd.f32 %v164, %v166
    %s168 = sld [smem:[#allocation7 + $0x15]]
    %v169 = vstv %s168
    %v170 = vmul.f32 %v58, %v169
    %v171 = vadd.f32 %v167, %v170
    %s172 = sld [smem:[#allocation7 + $0x16]]
    %v173 = vstv %s172
    %v174 = vmul.f32 %v60, %v173
    %v175 = vadd.f32 %v171, %v174
    %s176 = sld [smem:[#allocation7 + $0x17]]
    %v177 = vstv %s176
    %v178 = vmul.f32 %v62, %v177
    %v179 = vadd.f32 %v175, %v178
    %s180 = scalar_lea.vmem [#allocation9], 10
    %181 = vst [vmem:[%s180] sm:$0x3] %v179
    %s182 = sld [smem:[#allocation7 + $0x18]]
    %v183 = vstv %s182
    %v184 = vmul.f32 %v56, %v183
    %s185 = sld [smem:[#allocation8 + $0x6]]
    %v186 = vstv %s185
    %v187 = vadd.f32 %v184, %v186
    %s188 = sld [smem:[#allocation7 + $0x19]]
    %v189 = vstv %s188
    %v190 = vmul.f32 %v58, %v189
    %v191 = vadd.f32 %v187, %v190
    %s192 = sld [smem:[#allocation7 + $0x1a]]
    %v193 = vstv %s192
    %v194 = vmul.f32 %v60, %v193
    %v195 = vadd.f32 %v191, %v194
    %s196 = sld [smem:[#allocation7 + $0x1b]]
    %v197 = vstv %s196
    %v198 = vmul.f32 %v62, %v197
    %v199 = vadd.f32 %v195, %v198
    %s200 = scalar_lea.vmem [#allocation9], 12
    %201 = vst [vmem:[%s200] sm:$0x3] %v199
    %s202 = sld [smem:[#allocation7 + $0x1c]]
    %v203 = vstv %s202
    %v204 = vmul.f32 %v56, %v203
    %s205 = sld [smem:[#allocation8 + $0x7]]
    %v206 = vstv %s205
    %v207 = vadd.f32 %v204, %v206
    %s208 = sld [smem:[#allocation7 + $0x1d]]
    %v209 = vstv %s208
    %v210 = vmul.f32 %v58, %v209
    %v211 = vadd.f32 %v207, %v210
    %s212 = sld [smem:[#allocation7 + $0x1e]]
    %v213 = vstv %s212
    %v214 = vmul.f32 %v60, %v213
    %v215 = vadd.f32 %v211, %v214
    %s216 = sld [smem:[#allocation7 + $0x1f]]
    %v217 = vstv %s216
    %v218 = vmul.f32 %v62, %v217
    %v219 = vadd.f32 %v215, %v218
    %s220 = scalar_lea.vmem [#allocation9], 14
    %221 = vst [vmem:[%s220] sm:$0x3] %v219
    %s222 = scalar_lea.vmem [#allocation2], 8
    %v223 = vld [vmem:[%s222] sm:$0x3]
    %s224 = scalar_lea.vmem [#allocation2], 10
    %v225 = vld [vmem:[%s224] sm:$0x3]
    %s226 = scalar_lea.vmem [#allocation2], 12
    %v227 = vld [vmem:[%s226] sm:$0x3]
    %s228 = scalar_lea.vmem [#allocation2], 14
    %v229 = vld [vmem:[%s228] sm:$0x3]
    %s230 = sld [smem:[#allocation7]]
    %v231 = vstv %s230
    %v232 = vmul.f32 %v223, %v231
    %s233 = sld [smem:[#allocation8]]
    %v234 = vstv %s233
    %v235 = vadd.f32 %v232, %v234
    %s236 = sld [smem:[#allocation7 + $0x1]]
    %v237 = vstv %s236
    %v238 = vmul.f32 %v225, %v237
    %v239 = vadd.f32 %v235, %v238
    %s240 = sld [smem:[#allocation7 + $0x2]]
    %v241 = vstv %s240
    %v242 = vmul.f32 %v227, %v241
    %v243 = vadd.f32 %v239, %v242
    %s244 = sld [smem:[#allocation7 + $0x3]]
    %v245 = vstv %s244
    %v246 = vmul.f32 %v229, %v245
    %v247 = vadd.f32 %v243, %v246
    %s248 = scalar_lea.vmem [#allocation9], 16
    %249 = vst [vmem:[%s248] sm:$0x3] %v247
    %s250 = sld [smem:[#allocation7 + $0x4]]
    %v251 = vstv %s250
    %v252 = vmul.f32 %v223, %v251
    %s253 = sld [smem:[#allocation8 + $0x1]]
    %v254 = vstv %s253
    %v255 = vadd.f32 %v252, %v254
    %s256 = sld [smem:[#allocation7 + $0x5]]
    %v257 = vstv %s256
    %v258 = vmul.f32 %v225, %v257
    %v259 = vadd.f32 %v255, %v258
    %s260 = sld [smem:[#allocation7 + $0x6]]
    %v261 = vstv %s260
    %v262 = vmul.f32 %v227, %v261
    %v263 = vadd.f32 %v259, %v262
    %s264 = sld [smem:[#allocation7 + $0x7]]
    %v265 = vstv %s264
    %v266 = vmul.f32 %v229, %v265
    %v267 = vadd.f32 %v263, %v266
    %s268 = scalar_lea.vmem [#allocation9], 18
    %269 = vst [vmem:[%s268] sm:$0x3] %v267
    %s270 = sld [smem:[#allocation7 + $0x8]]
    %v271 = vstv %s270
    %v272 = vmul.f32 %v223, %v271
    %s273 = sld [smem:[#allocation8 + $0x2]]
    %v274 = vstv %s273
    %v275 = vadd.f32 %v272, %v274
    %s276 = sld [smem:[#allocation7 + $0x9]]
    %v277 = vstv %s276
    %v278 = vmul.f32 %v225, %v277
    %v279 = vadd.f32 %v275, %v278
    %s280 = sld [smem:[#allocation7 + $0xa]]
    %v281 = vstv %s280
    %v282 = vmul.f32 %v227, %v281
    %v283 = vadd.f32 %v279, %v282
    %s284 = sld [smem:[#allocation7 + $0xb]]
    %v285 = vstv %s284
    %v286 = vmul.f32 %v229, %v285
    %v287 = vadd.f32 %v283, %v286
    %s288 = scalar_lea.vmem [#allocation9], 20
    %289 = vst [vmem:[%s288] sm:$0x3] %v287
    %s290 = sld [smem:[#allocation7 + $0xc]]
    %v291 = vstv %s290
    %v292 = vmul.f32 %v223, %v291
    %s293 = sld [smem:[#allocation8 + $0x3]]
    %v294 = vstv %s293
    %v295 = vadd.f32 %v292, %v294
    %s296 = sld [smem:[#allocation7 + $0xd]]
    %v297 = vstv %s296
    %v298 = vmul.f32 %v225, %v297
    %v299 = vadd.f32 %v295, %v298
    %s300 = sld [smem:[#allocation7 + $0xe]]
    %v301 = vstv %s300
    %v302 = vmul.f32 %v227, %v301
    %v303 = vadd.f32 %v299, %v302
    %s304 = sld [smem:[#allocation7 + $0xf]]
    %v305 = vstv %s304
    %v306 = vmul.f32 %v229, %v305
    %v307 = vadd.f32 %v303, %v306
    %s308 = scalar_lea.vmem [#allocation9], 22
    %309 = vst [vmem:[%s308] sm:$0x3] %v307
    %s310 = sld [smem:[#allocation7 + $0x10]]
    %v311 = vstv %s310
    %v312 = vmul.f32 %v223, %v311
    %s313 = sld [smem:[#allocation8 + $0x4]]
    %v314 = vstv %s313
    %v315 = vadd.f32 %v312, %v314
    %s316 = sld [smem:[#allocation7 + $0x11]]
    %v317 = vstv %s316
    %v318 = vmul.f32 %v225, %v317
    %v319 = vadd.f32 %v315, %v318
    %s320 = sld [smem:[#allocation7 + $0x12]]
    %v321 = vstv %s320
    %v322 = vmul.f32 %v227, %v321
    %v323 = vadd.f32 %v319, %v322
    %s324 = sld [smem:[#allocation7 + $0x13]]
    %v325 = vstv %s324
    %v326 = vmul.f32 %v229, %v325
    %v327 = vadd.f32 %v323, %v326
    %s328 = scalar_lea.vmem [#allocation9], 24
    %329 = vst [vmem:[%s328] sm:$0x3] %v327
    %s330 = sld [smem:[#allocation7 + $0x14]]
    %v331 = vstv %s330
    %v332 = vmul.f32 %v223, %v331
    %s333 = sld [smem:[#allocation8 + $0x5]]
    %v334 = vstv %s333
    %v335 = vadd.f32 %v332, %v334
    %s336 = sld [smem:[#allocation7 + $0x15]]
    %v337 = vstv %s336
    %v338 = vmul.f32 %v225, %v337
    %v339 = vadd.f32 %v335, %v338
    %s340 = sld [smem:[#allocation7 + $0x16]]
    %v341 = vstv %s340
    %v342 = vmul.f32 %v227, %v341
    %v343 = vadd.f32 %v339, %v342
    %s344 = sld [smem:[#allocation7 + $0x17]]
    %v345 = vstv %s344
    %v346 = vmul.f32 %v229, %v345
    %v347 = vadd.f32 %v343, %v346
    %s348 = scalar_lea.vmem [#allocation9], 26
    %349 = vst [vmem:[%s348] sm:$0x3] %v347
    %s350 = sld [smem:[#allocation7 + $0x18]]
    %v351 = vstv %s350
    %v352 = vmul.f32 %v223, %v351
    %s353 = sld [smem:[#allocation8 + $0x6]]
    %v354 = vstv %s353
    %v355 = vadd.f32 %v352, %v354
    %s356 = sld [smem:[#allocation7 + $0x19]]
    %v357 = vstv %s356
    %v358 = vmul.f32 %v225, %v357
    %v359 = vadd.f32 %v355, %v358
    %s360 = sld [smem:[#allocation7 + $0x1a]]
    %v361 = vstv %s360
    %v362 = vmul.f32 %v227, %v361
    %v363 = vadd.f32 %v359, %v362
    %s364 = sld [smem:[#allocation7 + $0x1b]]
    %v365 = vstv %s364
    %v366 = vmul.f32 %v229, %v365
    %v367 = vadd.f32 %v363, %v366
    %s368 = scalar_lea.vmem [#allocation9], 28
    %369 = vst [vmem:[%s368] sm:$0x3] %v367
    %s370 = sld [smem:[#allocation7 + $0x1c]]
    %v371 = vstv %s370
    %v372 = vmul.f32 %v223, %v371
    %s373 = sld [smem:[#allocation8 + $0x7]]
    %v374 = vstv %s373
    %v375 = vadd.f32 %v372, %v374
    %s376 = sld [smem:[#allocation7 + $0x1d]]
    %v377 = vstv %s376
    %v378 = vmul.f32 %v225, %v377
    %v379 = vadd.f32 %v375, %v378
    %s380 = sld [smem:[#allocation7 + $0x1e]]
    %v381 = vstv %s380
    %v382 = vmul.f32 %v227, %v381
    %v383 = vadd.f32 %v379, %v382
    %s384 = sld [smem:[#allocation7 + $0x1f]]
    %v385 = vstv %s384
    %v386 = vmul.f32 %v229, %v385
    %v387 = vadd.f32 %v383, %v386
    %s388 = scalar_lea.vmem [#allocation9], 30
    %389 = vst [vmem:[%s388] sm:$0x3] %v387
    // Predicated region
    $region26: #{tpu_custom_call.1} parent=1 // pred_check
      _
    $region27: #{tpu_custom_call.1} parent=1 // pred_check_branch
      %391 = sbr.rel (0) target = $region29
    $region28: #{tpu_custom_call.1} parent=1 // pred_region
      %393 = vsyncadd [#allocation4], 0
      %s394 = sshll.u32 [#allocation9], 4
      %s395 = int_to_ptr.vmem [resolvable:$true] %s394
      %s396 = sshll.u32 %s3, 4
      %s397 = int_to_ptr.hbm [resolvable:$true] %s396
      %402 = dma.vmem_to_hbm [thread:$0]  %s395, 512, %s397, [#allocation4], 32, 32, 2
    $region29: #{tpu_custom_call.1} parent=1 // pred_fallthru
      _
    // Predicated region
    $region30: #{tpu_custom_call.1} parent=1 // pred_check
      _
    $region31: #{tpu_custom_call.1} parent=1 // pred_check_branch
      %404 = sbr.rel (0) target = $region33
    $region32: #{tpu_custom_call.1} parent=1 // pred_region
      %406 = dma.done [#allocation4], 512
    $region33: #{tpu_custom_call.1} parent=1 // pred_fallthru
      _
    %407 = vsyncpa [#allocation3], 1
    %408 = vsyncpa [#allocation4], 1
    %409 = vsyncpa [#allocation5], 1
    %410 = vsyncpa [#allocation6], 1

</llo_original>
